<compile_context>
chip_gen: v6e
topology: v6e:2x2x1
jax: 0.10.0
libtpu: 0.0.40
codegen_flags: <defaults>
</compile_context>

<pallas_src>
import jax
import jax.numpy as jnp
from jax import lax
from jax.experimental import pallas as pl
from jax.experimental.pallas import tpu as pltpu


def _round_up(x, m):
    return (x + m - 1) // m * m


def _make_kernel(width):
    """Builds the BasicBlock kernel for images of the given width."""

    def kernel(x_ref, masks_ref, w0_ref, w1_ref, w2_ref,
               s1_ref, b1_ref, s2_ref, b2_ref, out_ref):
        # x_ref    : (1, Cp, HW)   one batch element; channels on sublanes,
        #                          flattened spatial on lanes (lane-dense)
        # masks_ref: (9, 1, HW)    per-tap validity mask (implicit zero pad)
        # w*_ref   : (Pp, 9*C)     im2col-flattened weights, compute dtype
        # s*/b*    : (Pp, 1)       folded BN scale / bias, f32
        # out_ref  : (1, Pp, HW)
        hw = x_ref.shape[-1]
        cdtype = w0_ref.dtype
        masks = masks_ref[...]                        # (9, 1, HW), f32

        def conv3x3(act, w_ref):
            # act: (C, HW) f32 -> (Pp, HW) f32 via ONE K=9*C MXU matmul.
            slabs = []
            for tap in range(9):
                dy, dx = tap // 3 - 1, tap % 3 - 1
                delta = dy * width + dx               # flat spatial shift
                if delta == 0:
                    slabs.append(act)                 # center tap, no mask
                else:
                    sh = pltpu.roll(act, (-delta) % hw, axis=1)   # XLU shift
                    slabs.append(sh * masks[tap])     # zero the halo wrap
            patch = jnp.concatenate(slabs, axis=0)    # (9*C, HW), sublane-aligned
            return jnp.dot(w_ref[...], patch.astype(cdtype),
                           preferred_element_type=jnp.float32)

        x = x_ref[0].astype(jnp.float32)              # (Cp, HW)

        # x = conv(x); identity = x
        identity = conv3x3(x, w0_ref)                 # (Pp, HW) f32

        # out = relu(bn1(x)); out = conv1(out)
        t = jnp.maximum(identity * s1_ref[...] + b1_ref[...], 0.0)
        t = conv3x3(t, w1_ref)

        # out = relu(bn2(out)); out = conv2(out) + identity
        t = jnp.maximum(t * s2_ref[...] + b2_ref[...], 0.0)
        out = conv3x3(t, w2_ref) + identity

        out_ref[0] = out.astype(out_ref.dtype)        # lane-dense store

    return kernel


def basic_block_forward(x_nchw, params, eps=1e-5, compute_dtype=jnp.bfloat16):
    """Pallas implementation of BasicBlock.forward (stride=1, no downsample).

    compute_dtype controls only the MXU operand dtype (bf16 is native on
    v6e/v7x); accumulation and all elementwise math stay in f32.  Pass
    jnp.float32 for exact f32 matmuls.
    """
    N, Cin, H, W = x_nchw.shape
    P = params["w0"].shape[0]                         # planes (PyTorch OIHW)
    HW = H * W
    Cp = _round_up(Cin, 8)                            # sublane-aligned channels
    Pp = _round_up(P, 8)

    # NCHW -> (N, C, H*W): free reshape; pad channels to a sublane multiple.
    x = x_nchw.reshape(N, Cin, HW)
    if Cp != Cin:
        x = jnp.pad(x, ((0, 0), (0, Cp - Cin), (0, 0)))

    # OIHW (O, I, 3, 3) -> (Pp, 9*Ip) with flat K index (ky*3 + kx)*Ip + c.
    def prep_w(w, ip):
        o, i = w.shape[0], w.shape[1]
        w = jnp.transpose(w, (0, 2, 3, 1))            # (O, 3, 3, I)
        w = jnp.pad(w, ((0, Pp - o), (0, 0), (0, 0), (0, ip - i)))
        return w.reshape(Pp, 9 * ip).astype(compute_dtype)

    w0 = prep_w(params["w0"], Cp)
    w1 = prep_w(params["w1"], Pp)
    w2 = prep_w(params["w2"], Pp)

    # Fold eval-mode BatchNorm into scale/bias: y = x * s + b (padded rows 0).
    def fold_bn(g, beta, m, v):
        s = g / jnp.sqrt(v + eps)
        b = beta - m * s
        s = jnp.pad(s, (0, Pp - P)).reshape(Pp, 1).astype(jnp.float32)
        b = jnp.pad(b, (0, Pp - P)).reshape(Pp, 1).astype(jnp.float32)
        return s, b

    s1, b1 = fold_bn(params["g1"], params["beta1"], params["m1"], params["v1"])
    s2, b2 = fold_bn(params["g2"], params["beta2"], params["m2"], params["v2"])

    # Per-tap validity masks: tap (dy, dx) is valid at flat position n = h*W+w
    # iff 0 <= h+dy < H and 0 <= w+dx < W (the conv's implicit zero padding).
    n = jnp.arange(HW, dtype=jnp.int32)
    hh, ww = n // W, n % W
    masks = jnp.stack([
        ((hh + dy >= 0) & (hh + dy < H) & (ww + dx >= 0) & (ww + dx < W))
        for dy in (-1, 0, 1) for dx in (-1, 0, 1)
    ]).astype(jnp.float32).reshape(9, 1, HW)

    out = pl.pallas_call(
        _make_kernel(W),
        out_shape=jax.ShapeDtypeStruct((N, Pp, HW), x_nchw.dtype),
        grid_spec=pltpu.PrefetchScalarGridSpec(
            num_scalar_prefetch=0,
            grid=(N,),
            in_specs=[
                pl.BlockSpec((1, Cp, HW), lambda b: (b, 0, 0)),
                pl.BlockSpec((9, 1, HW), lambda b: (0, 0, 0)),
                pl.BlockSpec((Pp, 9 * Cp), lambda b: (0, 0)),
                pl.BlockSpec((Pp, 9 * Pp), lambda b: (0, 0)),
                pl.BlockSpec((Pp, 9 * Pp), lambda b: (0, 0)),
                pl.BlockSpec((Pp, 1), lambda b: (0, 0)),
                pl.BlockSpec((Pp, 1), lambda b: (0, 0)),
                pl.BlockSpec((Pp, 1), lambda b: (0, 0)),
                pl.BlockSpec((Pp, 1), lambda b: (0, 0)),
            ],
            out_specs=pl.BlockSpec((1, Pp, HW), lambda b: (b, 0, 0)),
        ),
        compiler_params=pltpu.CompilerParams(
            dimension_semantics=("parallel",),
            vmem_limit_bytes=32 * 1024 * 1024),
    )(x, masks, w0, w1, w2, s1, b1, s2, b2)

    # Drop channel padding, back to NCHW.
    return out[:, :P, :].reshape(N, P, H, W)


def basic_block_reference(x_nchw, params, eps=1e-5):
    """Pure-JAX reference matching the PyTorch forward (eval-mode BN)."""
    def conv(x, w):
        return lax.conv_general_dilated(
            x, w, window_strides=(1, 1), padding=[(1, 1), (1, 1)],
            dimension_numbers=('NCHW', 'OIHW', 'NCHW'))

    def bn(x, g, b, m, v):
        rs = lambda a: a.reshape(1, -1, 1, 1)
        return (x - rs(m)) / jnp.sqrt(rs(v) + eps) * rs(g) + rs(b)

    x = conv(x_nchw, params["w0"])
    identity = x
    out = jax.nn.relu(bn(x, params["g1"], params["beta1"],
                         params["m1"], params["v1"]))
    out = conv(out, params["w1"])
    out = jax.nn.relu(bn(out, params["g2"], params["beta2"],
                         params["m2"], params["v2"]))
    out = conv(out, params["w2"])
    return out + identity


if __name__ == "__main__":
    key = jax.random.PRNGKey(0)
    ks = jax.random.split(key, 12)

    N, Cin, P, H, W = 2, 4, 8, 16, 16   # batch, inplanes, planes, spatial

    x = jax.random.normal(ks[0], (N, Cin, H, W), jnp.float32)

    params = {
        # conv weights (PyTorch OIHW, bias=False)
        "w0": 0.1 * jax.random.normal(ks[1], (P, Cin, 3, 3), jnp.float32),
        "w1": 0.1 * jax.random.normal(ks[2], (P, P, 3, 3), jnp.float32),
        "w2": 0.1 * jax.random.normal(ks[3], (P, P, 3, 3), jnp.float32),
        # bn1 (gamma, beta, running_mean, running_var)
        "g1": 1.0 + 0.1 * jax.random.normal(ks[4], (P,), jnp.float32),
        "beta1": 0.1 * jax.random.normal(ks[5], (P,), jnp.float32),
        "m1": 0.1 * jax.random.normal(ks[6], (P,), jnp.float32),
        "v1": 1.0 + 0.5 * jax.random.uniform(ks[7], (P,), jnp.float32),
        # bn2
        "g2": 1.0 + 0.1 * jax.random.normal(ks[8], (P,), jnp.float32),
        "beta2": 0.1 * jax.random.normal(ks[9], (P,), jnp.float32),
        "m2": 0.1 * jax.random.normal(ks[10], (P,), jnp.float32),
        "v2": 1.0 + 0.5 * jax.random.uniform(ks[11], (P,), jnp.float32),
    }

    ref = jax.block_until_ready(basic_block_reference(x, params))

    # Exact path: f32 MXU operands — tight check against the lax.conv reference.
    out = jax.block_until_ready(
        basic_block_forward(x, params, compute_dtype=jnp.float32))
    assert out.shape == (N, P, H, W), out.shape
    assert jnp.allclose(out, ref, rtol=1e-4, atol=1e-4), \
        f"f32 max abs err = {jnp.max(jnp.abs(out - ref))}"

    # Fast path: bf16 MXU operands, f32 accumulation (v6e/v7x-native).
    out_bf16 = jax.block_until_ready(
        basic_block_forward(x, params, compute_dtype=jnp.bfloat16))
    assert jnp.allclose(out_bf16, ref, rtol=5e-2, atol=5e-2), \
        f"bf16 max abs err = {jnp.max(jnp.abs(out_bf16 - ref))}"

    print("KERNEL_OK")
</pallas_src>

<mosaic_0001>
module attributes {stable_mosaic.version = 11 : i64} {
  func.func @kernel(%arg0: i32, %arg1: memref<1x8x256xf32, #tpu.memory_space<vmem>>, %arg2: memref<9x1x256xf32, #tpu.memory_space<vmem>>, %arg3: memref<8x72xf32, #tpu.memory_space<vmem>>, %arg4: memref<8x72xf32, #tpu.memory_space<vmem>>, %arg5: memref<8x72xf32, #tpu.memory_space<vmem>>, %arg6: memref<8x1xf32, #tpu.memory_space<vmem>>, %arg7: memref<8x1xf32, #tpu.memory_space<vmem>>, %arg8: memref<8x1xf32, #tpu.memory_space<vmem>>, %arg9: memref<8x1xf32, #tpu.memory_space<vmem>>, %arg10: memref<1x8x256xf32, #tpu.memory_space<vmem>>) attributes {dimension_semantics = [#tpu.dimension_semantics<parallel>], iteration_bounds = array<i64: 2>, scalar_prefetch = 0 : i64, scratch_operands = 0 : i64, tpu.core_type = #tpu.core_type<tc>, window_params = [{transform_indices = @transform_0, window_bounds = array<i64: 1, 8, 256>}, {pipeline_mode = #tpu.pipeline_mode<synchronous>, transform_indices = @transform_1, window_bounds = array<i64: 9, 1, 256>}, {pipeline_mode = #tpu.pipeline_mode<synchronous>, transform_indices = @transform_2, window_bounds = array<i64: 8, 72>}, {pipeline_mode = #tpu.pipeline_mode<synchronous>, transform_indices = @transform_3, window_bounds = array<i64: 8, 72>}, {pipeline_mode = #tpu.pipeline_mode<synchronous>, transform_indices = @transform_4, window_bounds = array<i64: 8, 72>}, {pipeline_mode = #tpu.pipeline_mode<synchronous>, transform_indices = @transform_5, window_bounds = array<i64: 8, 1>}, {pipeline_mode = #tpu.pipeline_mode<synchronous>, transform_indices = @transform_6, window_bounds = array<i64: 8, 1>}, {pipeline_mode = #tpu.pipeline_mode<synchronous>, transform_indices = @transform_7, window_bounds = array<i64: 8, 1>}, {pipeline_mode = #tpu.pipeline_mode<synchronous>, transform_indices = @transform_8, window_bounds = array<i64: 8, 1>}, {transform_indices = @transform_9, window_bounds = array<i64: 1, 8, 256>}]} {
    %c0 = arith.constant 0 : index
    %c0_0 = arith.constant 0 : index
    %c0_1 = arith.constant 0 : index
    %0 = vector.load %arg2[%c0, %c0_0, %c0_1] : memref<9x1x256xf32, #tpu.memory_space<vmem>>, vector<9x1x256xf32>
    %c0_2 = arith.constant 0 : index
    %c0_3 = arith.constant 0 : index
    %c0_4 = arith.constant 0 : index
    %1 = vector.load %arg1[%c0_2, %c0_3, %c0_4] : memref<1x8x256xf32, #tpu.memory_space<vmem>>, vector<1x8x256xf32>
    %2 = vector.shape_cast %1 : vector<1x8x256xf32> to vector<8x256xf32>
    %c17_i32 = arith.constant 17 : i32
    %3 = tpu.dynamic_rotate %2 by %c17_i32 dim 1 : vector<8x256xf32>, i32 -> vector<8x256xf32>
    %4 = vector.extract_strided_slice %0 {offsets = [0, 0, 0], sizes = [1, 1, 256], strides = [1, 1, 1]} : vector<9x1x256xf32> to vector<1x1x256xf32>
    %5 = vector.shape_cast %4 : vector<1x1x256xf32> to vector<1x256xf32>
    %6 = vector.broadcast %5 : vector<1x256xf32> to vector<8x256xf32>
    %7 = arith.mulf %3, %6 : vector<8x256xf32>
    %c16_i32 = arith.constant 16 : i32
    %8 = tpu.dynamic_rotate %2 by %c16_i32 dim 1 : vector<8x256xf32>, i32 -> vector<8x256xf32>
    %9 = vector.extract_strided_slice %0 {offsets = [1, 0, 0], sizes = [1, 1, 256], strides = [1, 1, 1]} : vector<9x1x256xf32> to vector<1x1x256xf32>
    %10 = vector.shape_cast %9 : vector<1x1x256xf32> to vector<1x256xf32>
    %11 = vector.broadcast %10 : vector<1x256xf32> to vector<8x256xf32>
    %12 = arith.mulf %8, %11 : vector<8x256xf32>
    %c15_i32 = arith.constant 15 : i32
    %13 = tpu.dynamic_rotate %2 by %c15_i32 dim 1 : vector<8x256xf32>, i32 -> vector<8x256xf32>
    %14 = vector.extract_strided_slice %0 {offsets = [2, 0, 0], sizes = [1, 1, 256], strides = [1, 1, 1]} : vector<9x1x256xf32> to vector<1x1x256xf32>
    %15 = vector.shape_cast %14 : vector<1x1x256xf32> to vector<1x256xf32>
    %16 = vector.broadcast %15 : vector<1x256xf32> to vector<8x256xf32>
    %17 = arith.mulf %13, %16 : vector<8x256xf32>
    %c1_i32 = arith.constant 1 : i32
    %18 = tpu.dynamic_rotate %2 by %c1_i32 dim 1 : vector<8x256xf32>, i32 -> vector<8x256xf32>
    %19 = vector.extract_strided_slice %0 {offsets = [3, 0, 0], sizes = [1, 1, 256], strides = [1, 1, 1]} : vector<9x1x256xf32> to vector<1x1x256xf32>
    %20 = vector.shape_cast %19 : vector<1x1x256xf32> to vector<1x256xf32>
    %21 = vector.broadcast %20 : vector<1x256xf32> to vector<8x256xf32>
    %22 = arith.mulf %18, %21 : vector<8x256xf32>
    %c255_i32 = arith.constant 255 : i32
    %23 = tpu.dynamic_rotate %2 by %c255_i32 dim 1 : vector<8x256xf32>, i32 -> vector<8x256xf32>
    %24 = vector.extract_strided_slice %0 {offsets = [5, 0, 0], sizes = [1, 1, 256], strides = [1, 1, 1]} : vector<9x1x256xf32> to vector<1x1x256xf32>
    %25 = vector.shape_cast %24 : vector<1x1x256xf32> to vector<1x256xf32>
    %26 = vector.broadcast %25 : vector<1x256xf32> to vector<8x256xf32>
    %27 = arith.mulf %23, %26 : vector<8x256xf32>
    %c241_i32 = arith.constant 241 : i32
    %28 = tpu.dynamic_rotate %2 by %c241_i32 dim 1 : vector<8x256xf32>, i32 -> vector<8x256xf32>
    %29 = vector.extract_strided_slice %0 {offsets = [6, 0, 0], sizes = [1, 1, 256], strides = [1, 1, 1]} : vector<9x1x256xf32> to vector<1x1x256xf32>
    %30 = vector.shape_cast %29 : vector<1x1x256xf32> to vector<1x256xf32>
    %31 = vector.broadcast %30 : vector<1x256xf32> to vector<8x256xf32>
    %32 = arith.mulf %28, %31 : vector<8x256xf32>
    %c240_i32 = arith.constant 240 : i32
    %33 = tpu.dynamic_rotate %2 by %c240_i32 dim 1 : vector<8x256xf32>, i32 -> vector<8x256xf32>
    %34 = vector.extract_strided_slice %0 {offsets = [7, 0, 0], sizes = [1, 1, 256], strides = [1, 1, 1]} : vector<9x1x256xf32> to vector<1x1x256xf32>
    %35 = vector.shape_cast %34 : vector<1x1x256xf32> to vector<1x256xf32>
    %36 = vector.broadcast %35 : vector<1x256xf32> to vector<8x256xf32>
    %37 = arith.mulf %33, %36 : vector<8x256xf32>
    %c239_i32 = arith.constant 239 : i32
    %38 = tpu.dynamic_rotate %2 by %c239_i32 dim 1 : vector<8x256xf32>, i32 -> vector<8x256xf32>
    %39 = vector.extract_strided_slice %0 {offsets = [8, 0, 0], sizes = [1, 1, 256], strides = [1, 1, 1]} : vector<9x1x256xf32> to vector<1x1x256xf32>
    %40 = vector.shape_cast %39 : vector<1x1x256xf32> to vector<1x256xf32>
    %41 = vector.broadcast %40 : vector<1x256xf32> to vector<8x256xf32>
    %42 = arith.mulf %38, %41 : vector<8x256xf32>
    %43 = tpu.concatenate %7, %12, %17, %22, %2, %27, %32, %37, %42 in 0 : vector<8x256xf32>, vector<8x256xf32>, vector<8x256xf32>, vector<8x256xf32>, vector<8x256xf32>, vector<8x256xf32>, vector<8x256xf32>, vector<8x256xf32>, vector<8x256xf32> -> vector<72x256xf32>
    %c0_5 = arith.constant 0 : index
    %c0_6 = arith.constant 0 : index
    %44 = vector.load %arg3[%c0_5, %c0_6] : memref<8x72xf32, #tpu.memory_space<vmem>>, vector<8x72xf32>
    %cst = arith.constant dense<0.000000e+00> : vector<8x256xf32>
    %45 = tpu.matmul %44, %43, %cst {dimension_numbers = #tpu.dot_dimension_numbers<[1], [0], [0], [1], [0, 0, 1, 1], [], []>} : vector<8x72xf32>, vector<72x256xf32>, vector<8x256xf32> -> vector<8x256xf32>
    %c0_7 = arith.constant 0 : index
    %c0_8 = arith.constant 0 : index
    %46 = vector.load %arg6[%c0_7, %c0_8] : memref<8x1xf32, #tpu.memory_space<vmem>>, vector<8x1xf32>
    %47 = vector.broadcast %46 : vector<8x1xf32> to vector<8x256xf32>
    %48 = arith.mulf %45, %47 : vector<8x256xf32>
    %c0_9 = arith.constant 0 : index
    %c0_10 = arith.constant 0 : index
    %49 = vector.load %arg7[%c0_9, %c0_10] : memref<8x1xf32, #tpu.memory_space<vmem>>, vector<8x1xf32>
    %50 = vector.broadcast %49 : vector<8x1xf32> to vector<8x256xf32>
    %51 = arith.addf %48, %50 : vector<8x256xf32>
    %cst_11 = arith.constant 0.000000e+00 : f32
    %52 = vector.broadcast %cst_11 : f32 to vector<8x256xf32>
    %53 = arith.maximumf %51, %52 : vector<8x256xf32>
    %c17_i32_12 = arith.constant 17 : i32
    %54 = tpu.dynamic_rotate %53 by %c17_i32_12 dim 1 : vector<8x256xf32>, i32 -> vector<8x256xf32>
    %55 = vector.extract_strided_slice %0 {offsets = [0, 0, 0], sizes = [1, 1, 256], strides = [1, 1, 1]} : vector<9x1x256xf32> to vector<1x1x256xf32>
    %56 = vector.shape_cast %55 : vector<1x1x256xf32> to vector<1x256xf32>
    %57 = vector.broadcast %56 : vector<1x256xf32> to vector<8x256xf32>
    %58 = arith.mulf %54, %57 : vector<8x256xf32>
    %c16_i32_13 = arith.constant 16 : i32
    %59 = tpu.dynamic_rotate %53 by %c16_i32_13 dim 1 : vector<8x256xf32>, i32 -> vector<8x256xf32>
    %60 = vector.extract_strided_slice %0 {offsets = [1, 0, 0], sizes = [1, 1, 256], strides = [1, 1, 1]} : vector<9x1x256xf32> to vector<1x1x256xf32>
    %61 = vector.shape_cast %60 : vector<1x1x256xf32> to vector<1x256xf32>
    %62 = vector.broadcast %61 : vector<1x256xf32> to vector<8x256xf32>
    %63 = arith.mulf %59, %62 : vector<8x256xf32>
    %c15_i32_14 = arith.constant 15 : i32
    %64 = tpu.dynamic_rotate %53 by %c15_i32_14 dim 1 : vector<8x256xf32>, i32 -> vector<8x256xf32>
    %65 = vector.extract_strided_slice %0 {offsets = [2, 0, 0], sizes = [1, 1, 256], strides = [1, 1, 1]} : vector<9x1x256xf32> to vector<1x1x256xf32>
    %66 = vector.shape_cast %65 : vector<1x1x256xf32> to vector<1x256xf32>
    %67 = vector.broadcast %66 : vector<1x256xf32> to vector<8x256xf32>
    %68 = arith.mulf %64, %67 : vector<8x256xf32>
    %c1_i32_15 = arith.constant 1 : i32
    %69 = tpu.dynamic_rotate %53 by %c1_i32_15 dim 1 : vector<8x256xf32>, i32 -> vector<8x256xf32>
    %70 = vector.extract_strided_slice %0 {offsets = [3, 0, 0], sizes = [1, 1, 256], strides = [1, 1, 1]} : vector<9x1x256xf32> to vector<1x1x256xf32>
    %71 = vector.shape_cast %70 : vector<1x1x256xf32> to vector<1x256xf32>
    %72 = vector.broadcast %71 : vector<1x256xf32> to vector<8x256xf32>
    %73 = arith.mulf %69, %72 : vector<8x256xf32>
    %c255_i32_16 = arith.constant 255 : i32
    %74 = tpu.dynamic_rotate %53 by %c255_i32_16 dim 1 : vector<8x256xf32>, i32 -> vector<8x256xf32>
    %75 = vector.extract_strided_slice %0 {offsets = [5, 0, 0], sizes = [1, 1, 256], strides = [1, 1, 1]} : vector<9x1x256xf32> to vector<1x1x256xf32>
    %76 = vector.shape_cast %75 : vector<1x1x256xf32> to vector<1x256xf32>
    %77 = vector.broadcast %76 : vector<1x256xf32> to vector<8x256xf32>
    %78 = arith.mulf %74, %77 : vector<8x256xf32>
    %c241_i32_17 = arith.constant 241 : i32
    %79 = tpu.dynamic_rotate %53 by %c241_i32_17 dim 1 : vector<8x256xf32>, i32 -> vector<8x256xf32>
    %80 = vector.extract_strided_slice %0 {offsets = [6, 0, 0], sizes = [1, 1, 256], strides = [1, 1, 1]} : vector<9x1x256xf32> to vector<1x1x256xf32>
    %81 = vector.shape_cast %80 : vector<1x1x256xf32> to vector<1x256xf32>
    %82 = vector.broadcast %81 : vector<1x256xf32> to vector<8x256xf32>
    %83 = arith.mulf %79, %82 : vector<8x256xf32>
    %c240_i32_18 = arith.constant 240 : i32
    %84 = tpu.dynamic_rotate %53 by %c240_i32_18 dim 1 : vector<8x256xf32>, i32 -> vector<8x256xf32>
    %85 = vector.extract_strided_slice %0 {offsets = [7, 0, 0], sizes = [1, 1, 256], strides = [1, 1, 1]} : vector<9x1x256xf32> to vector<1x1x256xf32>
    %86 = vector.shape_cast %85 : vector<1x1x256xf32> to vector<1x256xf32>
    %87 = vector.broadcast %86 : vector<1x256xf32> to vector<8x256xf32>
    %88 = arith.mulf %84, %87 : vector<8x256xf32>
    %c239_i32_19 = arith.constant 239 : i32
    %89 = tpu.dynamic_rotate %53 by %c239_i32_19 dim 1 : vector<8x256xf32>, i32 -> vector<8x256xf32>
    %90 = vector.extract_strided_slice %0 {offsets = [8, 0, 0], sizes = [1, 1, 256], strides = [1, 1, 1]} : vector<9x1x256xf32> to vector<1x1x256xf32>
    %91 = vector.shape_cast %90 : vector<1x1x256xf32> to vector<1x256xf32>
    %92 = vector.broadcast %91 : vector<1x256xf32> to vector<8x256xf32>
    %93 = arith.mulf %89, %92 : vector<8x256xf32>
    %94 = tpu.concatenate %58, %63, %68, %73, %53, %78, %83, %88, %93 in 0 : vector<8x256xf32>, vector<8x256xf32>, vector<8x256xf32>, vector<8x256xf32>, vector<8x256xf32>, vector<8x256xf32>, vector<8x256xf32>, vector<8x256xf32>, vector<8x256xf32> -> vector<72x256xf32>
    %c0_20 = arith.constant 0 : index
    %c0_21 = arith.constant 0 : index
    %95 = vector.load %arg4[%c0_20, %c0_21] : memref<8x72xf32, #tpu.memory_space<vmem>>, vector<8x72xf32>
    %cst_22 = arith.constant dense<0.000000e+00> : vector<8x256xf32>
    %96 = tpu.matmul %95, %94, %cst_22 {dimension_numbers = #tpu.dot_dimension_numbers<[1], [0], [0], [1], [0, 0, 1, 1], [], []>} : vector<8x72xf32>, vector<72x256xf32>, vector<8x256xf32> -> vector<8x256xf32>
    %c0_23 = arith.constant 0 : index
    %c0_24 = arith.constant 0 : index
    %97 = vector.load %arg8[%c0_23, %c0_24] : memref<8x1xf32, #tpu.memory_space<vmem>>, vector<8x1xf32>
    %98 = vector.broadcast %97 : vector<8x1xf32> to vector<8x256xf32>
    %99 = arith.mulf %96, %98 : vector<8x256xf32>
    %c0_25 = arith.constant 0 : index
    %c0_26 = arith.constant 0 : index
    %100 = vector.load %arg9[%c0_25, %c0_26] : memref<8x1xf32, #tpu.memory_space<vmem>>, vector<8x1xf32>
    %101 = vector.broadcast %100 : vector<8x1xf32> to vector<8x256xf32>
    %102 = arith.addf %99, %101 : vector<8x256xf32>
    %cst_27 = arith.constant 0.000000e+00 : f32
    %103 = vector.broadcast %cst_27 : f32 to vector<8x256xf32>
    %104 = arith.maximumf %102, %103 : vector<8x256xf32>
    %c17_i32_28 = arith.constant 17 : i32
    %105 = tpu.dynamic_rotate %104 by %c17_i32_28 dim 1 : vector<8x256xf32>, i32 -> vector<8x256xf32>
    %106 = vector.extract_strided_slice %0 {offsets = [0, 0, 0], sizes = [1, 1, 256], strides = [1, 1, 1]} : vector<9x1x256xf32> to vector<1x1x256xf32>
    %107 = vector.shape_cast %106 : vector<1x1x256xf32> to vector<1x256xf32>
    %108 = vector.broadcast %107 : vector<1x256xf32> to vector<8x256xf32>
    %109 = arith.mulf %105, %108 : vector<8x256xf32>
    %c16_i32_29 = arith.constant 16 : i32
    %110 = tpu.dynamic_rotate %104 by %c16_i32_29 dim 1 : vector<8x256xf32>, i32 -> vector<8x256xf32>
    %111 = vector.extract_strided_slice %0 {offsets = [1, 0, 0], sizes = [1, 1, 256], strides = [1, 1, 1]} : vector<9x1x256xf32> to vector<1x1x256xf32>
    %112 = vector.shape_cast %111 : vector<1x1x256xf32> to vector<1x256xf32>
    %113 = vector.broadcast %112 : vector<1x256xf32> to vector<8x256xf32>
    %114 = arith.mulf %110, %113 : vector<8x256xf32>
    %c15_i32_30 = arith.constant 15 : i32
    %115 = tpu.dynamic_rotate %104 by %c15_i32_30 dim 1 : vector<8x256xf32>, i32 -> vector<8x256xf32>
    %116 = vector.extract_strided_slice %0 {offsets = [2, 0, 0], sizes = [1, 1, 256], strides = [1, 1, 1]} : vector<9x1x256xf32> to vector<1x1x256xf32>
    %117 = vector.shape_cast %116 : vector<1x1x256xf32> to vector<1x256xf32>
    %118 = vector.broadcast %117 : vector<1x256xf32> to vector<8x256xf32>
    %119 = arith.mulf %115, %118 : vector<8x256xf32>
    %c1_i32_31 = arith.constant 1 : i32
    %120 = tpu.dynamic_rotate %104 by %c1_i32_31 dim 1 : vector<8x256xf32>, i32 -> vector<8x256xf32>
    %121 = vector.extract_strided_slice %0 {offsets = [3, 0, 0], sizes = [1, 1, 256], strides = [1, 1, 1]} : vector<9x1x256xf32> to vector<1x1x256xf32>
    %122 = vector.shape_cast %121 : vector<1x1x256xf32> to vector<1x256xf32>
    %123 = vector.broadcast %122 : vector<1x256xf32> to vector<8x256xf32>
    %124 = arith.mulf %120, %123 : vector<8x256xf32>
    %c255_i32_32 = arith.constant 255 : i32
    %125 = tpu.dynamic_rotate %104 by %c255_i32_32 dim 1 : vector<8x256xf32>, i32 -> vector<8x256xf32>
    %126 = vector.extract_strided_slice %0 {offsets = [5, 0, 0], sizes = [1, 1, 256], strides = [1, 1, 1]} : vector<9x1x256xf32> to vector<1x1x256xf32>
    %127 = vector.shape_cast %126 : vector<1x1x256xf32> to vector<1x256xf32>
    %128 = vector.broadcast %127 : vector<1x256xf32> to vector<8x256xf32>
    %129 = arith.mulf %125, %128 : vector<8x256xf32>
    %c241_i32_33 = arith.constant 241 : i32
    %130 = tpu.dynamic_rotate %104 by %c241_i32_33 dim 1 : vector<8x256xf32>, i32 -> vector<8x256xf32>
    %131 = vector.extract_strided_slice %0 {offsets = [6, 0, 0], sizes = [1, 1, 256], strides = [1, 1, 1]} : vector<9x1x256xf32> to vector<1x1x256xf32>
    %132 = vector.shape_cast %131 : vector<1x1x256xf32> to vector<1x256xf32>
    %133 = vector.broadcast %132 : vector<1x256xf32> to vector<8x256xf32>
    %134 = arith.mulf %130, %133 : vector<8x256xf32>
    %c240_i32_34 = arith.constant 240 : i32
    %135 = tpu.dynamic_rotate %104 by %c240_i32_34 dim 1 : vector<8x256xf32>, i32 -> vector<8x256xf32>
    %136 = vector.extract_strided_slice %0 {offsets = [7, 0, 0], sizes = [1, 1, 256], strides = [1, 1, 1]} : vector<9x1x256xf32> to vector<1x1x256xf32>
    %137 = vector.shape_cast %136 : vector<1x1x256xf32> to vector<1x256xf32>
    %138 = vector.broadcast %137 : vector<1x256xf32> to vector<8x256xf32>
    %139 = arith.mulf %135, %138 : vector<8x256xf32>
    %c239_i32_35 = arith.constant 239 : i32
    %140 = tpu.dynamic_rotate %104 by %c239_i32_35 dim 1 : vector<8x256xf32>, i32 -> vector<8x256xf32>
    %141 = vector.extract_strided_slice %0 {offsets = [8, 0, 0], sizes = [1, 1, 256], strides = [1, 1, 1]} : vector<9x1x256xf32> to vector<1x1x256xf32>
    %142 = vector.shape_cast %141 : vector<1x1x256xf32> to vector<1x256xf32>
    %143 = vector.broadcast %142 : vector<1x256xf32> to vector<8x256xf32>
    %144 = arith.mulf %140, %143 : vector<8x256xf32>
    %145 = tpu.concatenate %109, %114, %119, %124, %104, %129, %134, %139, %144 in 0 : vector<8x256xf32>, vector<8x256xf32>, vector<8x256xf32>, vector<8x256xf32>, vector<8x256xf32>, vector<8x256xf32>, vector<8x256xf32>, vector<8x256xf32>, vector<8x256xf32> -> vector<72x256xf32>
    %c0_36 = arith.constant 0 : index
    %c0_37 = arith.constant 0 : index
    %146 = vector.load %arg5[%c0_36, %c0_37] : memref<8x72xf32, #tpu.memory_space<vmem>>, vector<8x72xf32>
    %cst_38 = arith.constant dense<0.000000e+00> : vector<8x256xf32>
    %147 = tpu.matmul %146, %145, %cst_38 {dimension_numbers = #tpu.dot_dimension_numbers<[1], [0], [0], [1], [0, 0, 1, 1], [], []>} : vector<8x72xf32>, vector<72x256xf32>, vector<8x256xf32> -> vector<8x256xf32>
    %148 = arith.addf %147, %45 : vector<8x256xf32>
    %c0_39 = arith.constant 0 : index
    %c0_40 = arith.constant 0 : index
    %c0_41 = arith.constant 0 : index
    %149 = vector.load %arg10[%c0_39, %c0_40, %c0_41] : memref<1x8x256xf32, #tpu.memory_space<vmem>>, vector<1x8x256xf32>
    %150 = vector.shape_cast %149 : vector<1x8x256xf32> to vector<8x256xf32>
    %151 = vector.shape_cast %148 : vector<8x256xf32> to vector<1x8x256xf32>
    tpu.vector_store %arg10[%c0_39, %c0_40, %c0_41], %151 {strides = array<i32>} : memref<1x8x256xf32, #tpu.memory_space<vmem>>, vector<1x8x256xf32>,
    return
  }
  func.func @transform_0(%arg0: i32) -> (i32, i32, i32) {
    %c0_i32 = arith.constant 0 : i32
    %c0_i32_0 = arith.constant 0 : i32
    %c0_i32_1 = arith.constant 0 : i32
    return %arg0, %c0_i32, %c0_i32_0 : i32, i32, i32
  }
  func.func @transform_1(%arg0: i32) -> (i32, i32, i32) {
    %c0_i32 = arith.constant 0 : i32
    %c0_i32_0 = arith.constant 0 : i32
    %c0_i32_1 = arith.constant 0 : i32
    %c0_i32_2 = arith.constant 0 : i32
    return %c0_i32, %c0_i32_0, %c0_i32_1 : i32, i32, i32
  }
  func.func @transform_2(%arg0: i32) -> (i32, i32) {
    %c0_i32 = arith.constant 0 : i32
    %c0_i32_0 = arith.constant 0 : i32
    %c0_i32_1 = arith.constant 0 : i32
    return %c0_i32, %c0_i32_0 : i32, i32
  }
  func.func @transform_3(%arg0: i32) -> (i32, i32) {
    %c0_i32 = arith.constant 0 : i32
    %c0_i32_0 = arith.constant 0 : i32
    %c0_i32_1 = arith.constant 0 : i32
    return %c0_i32, %c0_i32_0 : i32, i32
  }
  func.func @transform_4(%arg0: i32) -> (i32, i32) {
    %c0_i32 = arith.constant 0 : i32
    %c0_i32_0 = arith.constant 0 : i32
    %c0_i32_1 = arith.constant 0 : i32
    return %c0_i32, %c0_i32_0 : i32, i32
  }
  func.func @transform_5(%arg0: i32) -> (i32, i32) {
    %c0_i32 = arith.constant 0 : i32
    %c0_i32_0 = arith.constant 0 : i32
    %c0_i32_1 = arith.constant 0 : i32
    return %c0_i32, %c0_i32_0 : i32, i32
  }
  func.func @transform_6(%arg0: i32) -> (i32, i32) {
    %c0_i32 = arith.constant 0 : i32
    %c0_i32_0 = arith.constant 0 : i32
    %c0_i32_1 = arith.constant 0 : i32
    return %c0_i32, %c0_i32_0 : i32, i32
  }
  func.func @transform_7(%arg0: i32) -> (i32, i32) {
    %c0_i32 = arith.constant 0 : i32
    %c0_i32_0 = arith.constant 0 : i32
    %c0_i32_1 = arith.constant 0 : i32
    return %c0_i32, %c0_i32_0 : i32, i32
  }
  func.func @transform_8(%arg0: i32) -> (i32, i32) {
    %c0_i32 = arith.constant 0 : i32
    %c0_i32_0 = arith.constant 0 : i32
    %c0_i32_1 = arith.constant 0 : i32
    return %c0_i32, %c0_i32_0 : i32, i32
  }
  func.func @transform_9(%arg0: i32) -> (i32, i32, i32) {
    %c0_i32 = arith.constant 0 : i32
    %c0_i32_0 = arith.constant 0 : i32
    %c0_i32_1 = arith.constant 0 : i32
    return %arg0, %c0_i32, %c0_i32_0 : i32, i32, i32
  }
}

</mosaic_0001>

<llo_original>
// kernel: tpu_custom_call.1
$region0: #{tpu_custom_call.1}
  #allocation0 [shape = 'u32[]', space=smem, size = 0x4, offset = 0x4, fixed_abs, tag = 'smem constant byte address 0x4 - core index']
  #allocation1 [shape = 'u32[144,128]{1,0:T(1,128)}', space=vmem, size = 0x12000, scoped, tag = 'internal scratch']
  %s0 = inlined_call_operand.vmem [shape: f32[2,8,256], index: 0, kind: input, shape index: {}]
  %s1 = inlined_call_operand.hbm [shape: f32[9,1,256], index: 1, kind: input, shape index: {}]
  %s2 = inlined_call_operand.hbm [shape: f32[8,72], index: 2, kind: input, shape index: {}]
  %s3 = inlined_call_operand.vmem [shape: f32[8,72], index: 3, kind: input, shape index: {}]
  %s4 = inlined_call_operand.hbm [shape: f32[8,72], index: 4, kind: input, shape index: {}]
  %s5 = inlined_call_operand.vmem [shape: f32[8,1], index: 5, kind: input, shape index: {}]
  %s6 = inlined_call_operand.vmem [shape: f32[8,1], index: 6, kind: input, shape index: {}]
  %s7 = inlined_call_operand.vmem [shape: f32[8,1], index: 7, kind: input, shape index: {}]
  %s8 = inlined_call_operand.vmem [shape: f32[8,1], index: 8, kind: input, shape index: {}]
  %s9 = inlined_call_operand.hbm [shape: f32[2,8,256], index: 9, kind: output, shape index: {}]
  %s10 = sld [smem:[#allocation0]]
  $region81: #{tpu_custom_call.1} parent=0
    _
  %s12 = ssub.s32 1, %s10
  %s13 = scalar_select 0, %s12, %s10
  $region1: #{tpu_custom_call.1} parent=0
    #allocation2 [shape = 'u8[9216]{0}', space=vmem, size = 0x2400, scoped, tag = 'input window, operand 1, single buffered']
    #allocation3 [shape = 's32[2]{0}', space=sflag, size = 0x8, scoped, tag = 'scoped memory for tpu_custom_call.1']
    #allocation4 [shape = 's32[2]{0}', space=sflag, size = 0x8, scoped, tag = 'scoped memory for tpu_custom_call.1']
    #allocation5 [shape = 'u8[4096]{0}', space=vmem, size = 0x1000, scoped, tag = 'input window, operand 2, single buffered']
    #allocation6 [shape = 's32[1]{0}', space=sflag, size = 0x4, scoped, tag = 'scoped memory for tpu_custom_call.1']
    #allocation7 [shape = 'u8[4096]{0}', space=vmem, size = 0x1000, scoped, tag = 'input window, operand 4, single buffered']
    #allocation8 [shape = 'u8[16384]{0}', space=vmem, size = 0x4000, scoped, tag = 'output window, operand 0']
    %14 = vsyncpa [#allocation3], 0
    %15 = vsyncpa [#allocation6], 0
    %16 = vsyncpa [#allocation4], 0
    %s17 = scalar_lea.sflag [#allocation4], 1
    %18 = vsyncpa %s17, 0
    loop: start=0, step=1, limit=4
    $region2: #{tpu_custom_call.1} parent=1 // loop_pre_header
      _
    $region3: #{tpu_custom_call.1} parent=1 // loop_header
      %s20 = sphi 0, %s24
      %p21 = scmp.ge.s32.totalorder %s20, 4
      %s30 = sphi 0, %s32
      %s33 = sphi 0, %s30
      %s34 = sphi 0, %s33
      %s50 = sphi 0, %s34
      %s54 = sphi 0, %s54
      %s56 = sphi 0, %s54
      %s57 = sphi 0, %s56
      %s71 = sphi 0, %s57
      %s75 = sphi 0, %s75
      %s77 = sphi 0, %s75
      %s78 = sphi 0, %s77
      %s92 = sphi 0, %s78
      %s96 = sphi 0, %s96
      %s98 = sphi 0, %s96
      %s99 = sphi 0, %s98
      %s113 = sphi 0, %s99
      %s117 = sphi 0, %s117
      %s119 = sphi 0, %s117
      %s120 = sphi 0, %s119
      %s134 = sphi 0, %s120
      %s138 = sphi 0, %s138
      %s140 = sphi 0, %s138
      %s141 = sphi 0, %s140
      %s155 = sphi 0, %s141
      %s159 = sphi 0, %s159
      %s161 = sphi 0, %s159
      %s162 = sphi 0, %s161
      %s176 = sphi 0, %s162
      %s180 = sphi 0, %s180
      %s182 = sphi 0, %s180
      %s183 = sphi 0, %s182
      %s197 = sphi 0, %s183
      %s201 = sphi 0, %s201
      %s203 = sphi 0, %s201
      %s204 = sphi 0, %s203
      %s218 = sphi 0, %s204
      %s224 = sphi 0, %s226
      %s227 = sphi 0, %s224
      %s228 = sphi 0, %s227
      %s244 = sphi 0, %s228
    $region4: #{tpu_custom_call.1} parent=1 // loop_header_branch
      %23 = sbr.rel (%p21) target = $region8
    $region5: #{tpu_custom_call.1} parent=1 // loop_body
      %s25 = ssub.s32 %s20, 1
      %s26 = ssub.s32 %s20, 2
      %s27 = sadd.s32 %s20, 1
      %s28 = ssub.s32 %s20, %s27
      %p29 = scmp.eq.s32.totalorder %s28, 0
      %s31 = sadd.s32 %s30, 1
      %s32 = scalar_select %p29, %s30, %s31
      %p35 = pneg %p29
      %p36 = scmp.eq.s32.totalorder %s20, 1
      %p37 = por %p35, %p36
      %p38 = scmp.ne.s32.totalorder %s30, %s33
      %p39 = scmp.eq.s32.totalorder %s20, 0
      %p40 = por %p38, %p39
      %p41 = scmp.ne.s32.totalorder %s30, %s33
      %p42 = scmp.eq.s32.totalorder %s25, 1
      %p43 = por %p41, %p42
      %p44 = scmp.ne.s32.totalorder %s33, %s34
      %p45 = scmp.eq.s32.totalorder %s25, 0
      %p46 = por %p44, %p45
      %p47 = scmp.ne.s32.totalorder %s33, %s34
      %p48 = scmp.eq.s32.totalorder %s26, 1
      %p49 = por %p47, %p48
      %p51 = scmp.ne.s32.totalorder %s34, %s50
      %p52 = scmp.eq.s32.totalorder %s26, 0
      %p53 = por %p51, %p52
      %s55 = sadd.s32 %s54, 1
      %p58 = scmp.eq.s32.totalorder %s20, 1
      %p59 = scmp.ne.s32.totalorder %s54, %s56
      %p60 = scmp.eq.s32.totalorder %s20, 0
      %p61 = por %p59, %p60
      %p62 = scmp.ne.s32.totalorder %s54, %s56
      %p63 = scmp.eq.s32.totalorder %s25, 1
      %p64 = por %p62, %p63
      %p65 = scmp.ne.s32.totalorder %s56, %s57
      %p66 = scmp.eq.s32.totalorder %s25, 0
      %p67 = por %p65, %p66
      %p68 = scmp.ne.s32.totalorder %s56, %s57
      %p69 = scmp.eq.s32.totalorder %s26, 1
      %p70 = por %p68, %p69
      %p72 = scmp.ne.s32.totalorder %s57, %s71
      %p73 = scmp.eq.s32.totalorder %s26, 0
      %p74 = por %p72, %p73
      %s76 = sadd.s32 %s75, 1
      %p79 = scmp.eq.s32.totalorder %s20, 1
      %p80 = scmp.ne.s32.totalorder %s75, %s77
      %p81 = scmp.eq.s32.totalorder %s20, 0
      %p82 = por %p80, %p81
      %p83 = scmp.ne.s32.totalorder %s75, %s77
      %p84 = scmp.eq.s32.totalorder %s25, 1
      %p85 = por %p83, %p84
      %p86 = scmp.ne.s32.totalorder %s77, %s78
      %p87 = scmp.eq.s32.totalorder %s25, 0
      %p88 = por %p86, %p87
      %p89 = scmp.ne.s32.totalorder %s77, %s78
      %p90 = scmp.eq.s32.totalorder %s26, 1
      %p91 = por %p89, %p90
      %p93 = scmp.ne.s32.totalorder %s78, %s92
      %p94 = scmp.eq.s32.totalorder %s26, 0
      %p95 = por %p93, %p94
      %s97 = sadd.s32 %s96, 1
      %p100 = scmp.eq.s32.totalorder %s20, 1
      %p101 = scmp.ne.s32.totalorder %s96, %s98
      %p102 = scmp.eq.s32.totalorder %s20, 0
      %p103 = por %p101, %p102
      %p104 = scmp.ne.s32.totalorder %s96, %s98
      %p105 = scmp.eq.s32.totalorder %s25, 1
      %p106 = por %p104, %p105
      %p107 = scmp.ne.s32.totalorder %s98, %s99
      %p108 = scmp.eq.s32.totalorder %s25, 0
      %p109 = por %p107, %p108
      %p110 = scmp.ne.s32.totalorder %s98, %s99
      %p111 = scmp.eq.s32.totalorder %s26, 1
      %p112 = por %p110, %p111
      %p114 = scmp.ne.s32.totalorder %s99, %s113
      %p115 = scmp.eq.s32.totalorder %s26, 0
      %p116 = por %p114, %p115
      %s118 = sadd.s32 %s117, 1
      %p121 = scmp.eq.s32.totalorder %s20, 1
      %p122 = scmp.ne.s32.totalorder %s117, %s119
      %p123 = scmp.eq.s32.totalorder %s20, 0
      %p124 = por %p122, %p123
      %p125 = scmp.ne.s32.totalorder %s117, %s119
      %p126 = scmp.eq.s32.totalorder %s25, 1
      %p127 = por %p125, %p126
      %p128 = scmp.ne.s32.totalorder %s119, %s120
      %p129 = scmp.eq.s32.totalorder %s25, 0
      %p130 = por %p128, %p129
      %p131 = scmp.ne.s32.totalorder %s119, %s120
      %p132 = scmp.eq.s32.totalorder %s26, 1
      %p133 = por %p131, %p132
      %p135 = scmp.ne.s32.totalorder %s120, %s134
      %p136 = scmp.eq.s32.totalorder %s26, 0
      %p137 = por %p135, %p136
      %s139 = sadd.s32 %s138, 1
      %p142 = scmp.eq.s32.totalorder %s20, 1
      %p143 = scmp.ne.s32.totalorder %s138, %s140
      %p144 = scmp.eq.s32.totalorder %s20, 0
      %p145 = por %p143, %p144
      %p146 = scmp.ne.s32.totalorder %s138, %s140
      %p147 = scmp.eq.s32.totalorder %s25, 1
      %p148 = por %p146, %p147
      %p149 = scmp.ne.s32.totalorder %s140, %s141
      %p150 = scmp.eq.s32.totalorder %s25, 0
      %p151 = por %p149, %p150
      %p152 = scmp.ne.s32.totalorder %s140, %s141
      %p153 = scmp.eq.s32.totalorder %s26, 1
      %p154 = por %p152, %p153
      %p156 = scmp.ne.s32.totalorder %s141, %s155
      %p157 = scmp.eq.s32.totalorder %s26, 0
      %p158 = por %p156, %p157
      %s160 = sadd.s32 %s159, 1
      %p163 = scmp.eq.s32.totalorder %s20, 1
      %p164 = scmp.ne.s32.totalorder %s159, %s161
      %p165 = scmp.eq.s32.totalorder %s20, 0
      %p166 = por %p164, %p165
      %p167 = scmp.ne.s32.totalorder %s159, %s161
      %p168 = scmp.eq.s32.totalorder %s25, 1
      %p169 = por %p167, %p168
      %p170 = scmp.ne.s32.totalorder %s161, %s162
      %p171 = scmp.eq.s32.totalorder %s25, 0
      %p172 = por %p170, %p171
      %p173 = scmp.ne.s32.totalorder %s161, %s162
      %p174 = scmp.eq.s32.totalorder %s26, 1
      %p175 = por %p173, %p174
      %p177 = scmp.ne.s32.totalorder %s162, %s176
      %p178 = scmp.eq.s32.totalorder %s26, 0
      %p179 = por %p177, %p178
      %s181 = sadd.s32 %s180, 1
      %p184 = scmp.eq.s32.totalorder %s20, 1
      %p185 = scmp.ne.s32.totalorder %s180, %s182
      %p186 = scmp.eq.s32.totalorder %s20, 0
      %p187 = por %p185, %p186
      %p188 = scmp.ne.s32.totalorder %s180, %s182
      %p189 = scmp.eq.s32.totalorder %s25, 1
      %p190 = por %p188, %p189
      %p191 = scmp.ne.s32.totalorder %s182, %s183
      %p192 = scmp.eq.s32.totalorder %s25, 0
      %p193 = por %p191, %p192
      %p194 = scmp.ne.s32.totalorder %s182, %s183
      %p195 = scmp.eq.s32.totalorder %s26, 1
      %p196 = por %p194, %p195
      %p198 = scmp.ne.s32.totalorder %s183, %s197
      %p199 = scmp.eq.s32.totalorder %s26, 0
      %p200 = por %p198, %p199
      %s202 = sadd.s32 %s201, 1
      %p205 = scmp.eq.s32.totalorder %s20, 1
      %p206 = scmp.ne.s32.totalorder %s201, %s203
      %p207 = scmp.eq.s32.totalorder %s20, 0
      %p208 = por %p206, %p207
      %p209 = scmp.ne.s32.totalorder %s201, %s203
      %p210 = scmp.eq.s32.totalorder %s25, 1
      %p211 = por %p209, %p210
      %p212 = scmp.ne.s32.totalorder %s203, %s204
      %p213 = scmp.eq.s32.totalorder %s25, 0
      %p214 = por %p212, %p213
      %p215 = scmp.ne.s32.totalorder %s203, %s204
      %p216 = scmp.eq.s32.totalorder %s26, 1
      %p217 = por %p215, %p216
      %p219 = scmp.ne.s32.totalorder %s204, %s218
      %p220 = scmp.eq.s32.totalorder %s26, 0
      %p221 = por %p219, %p220
      %s222 = ssub.s32 %s20, %s27
      %p223 = scmp.eq.s32.totalorder %s222, 0
      %s225 = sadd.s32 %s224, 1
      %s226 = scalar_select %p223, %s224, %s225
      %p229 = pneg %p223
      %p230 = scmp.eq.s32.totalorder %s20, 1
      %p231 = por %p229, %p230
      %p232 = scmp.ne.s32.totalorder %s224, %s227
      %p233 = scmp.eq.s32.totalorder %s20, 0
      %p234 = por %p232, %p233
      %p235 = scmp.ne.s32.totalorder %s224, %s227
      %p236 = scmp.eq.s32.totalorder %s25, 1
      %p237 = por %p235, %p236
      %p238 = scmp.ne.s32.totalorder %s227, %s228
      %p239 = scmp.eq.s32.totalorder %s25, 0
      %p240 = por %p238, %p239
      %p241 = scmp.ne.s32.totalorder %s227, %s228
      %p242 = scmp.eq.s32.totalorder %s26, 1
      %p243 = por %p241, %p242
      %p245 = scmp.ne.s32.totalorder %s228, %s244
      %p246 = scmp.eq.s32.totalorder %s26, 0
      %p247 = por %p245, %p246
      %p248 = scmp.le.s32.totalorder 1, %s20
      %p249 = scmp.lt.s32.totalorder %s20, 3
      %p250 = pnand %p248, %p249
      %p251 = pneg %p250
      // Predicated region
      $region9: #{tpu_custom_call.1} parent=5 // pred_check
        _
      $region10: #{tpu_custom_call.1} parent=5 // pred_check_branch
        %253 = sbr.rel (%p250) target = $region12
      $region11: #{tpu_custom_call.1} parent=5 // pred_region
        %s254 = ssub.s32 %s20, 1
        // Predicated region
        $region13: #{tpu_custom_call.1} parent=11 // pred_check
          %p255 = pneg %p67
        $region14: #{tpu_custom_call.1} parent=11 // pred_check_branch
          %257 = sbr.rel (%p255) target = $region16
        $region15: #{tpu_custom_call.1} parent=11 // pred_region
          %s259 = ssub.s32 288, 288
          %260 = vsyncadd [#allocation3], %s259
          %s261 = sshll.u32 [#allocation2], 4
          %s262 = int_to_ptr.vmem [resolvable:$true] %s261
          %267 = dma.hbm_to_vmem [thread:$0]  %s1, 288, %s262, [#allocation3], 32, 32, 2
        $region16: #{tpu_custom_call.1} parent=11 // pred_fallthru
          _
        // Predicated region
        $region17: #{tpu_custom_call.1} parent=11 // pred_check
          %p268 = pneg %p88
        $region18: #{tpu_custom_call.1} parent=11 // pred_check_branch
          %270 = sbr.rel (%p268) target = $region20
        $region19: #{tpu_custom_call.1} parent=11 // pred_region
          %s272 = ssub.s32 128, 128
          %273 = vsyncadd [#allocation6], %s272
          %s275 = sshll.u32 [#allocation5], 4
          %s276 = int_to_ptr.vmem [resolvable:$true] %s275
          %278 = dma.hbm_to_vmem [thread:$0]  %s2, 128, %s276, [#allocation6]
        $region20: #{tpu_custom_call.1} parent=11 // pred_fallthru
          _
        // Predicated region
        $region21: #{tpu_custom_call.1} parent=11 // pred_check
          %p279 = pneg %p109
        $region22: #{tpu_custom_call.1} parent=11 // pred_check_branch
          %281 = sbr.rel (%p279) target = $region24
        $region23: #{tpu_custom_call.1} parent=11 // pred_region
          _
        $region24: #{tpu_custom_call.1} parent=11 // pred_fallthru
          _
        // Predicated region
        $region25: #{tpu_custom_call.1} parent=11 // pred_check
          %p282 = pneg %p130
        $region26: #{tpu_custom_call.1} parent=11 // pred_check_branch
          %284 = sbr.rel (%p282) target = $region28
        $region27: #{tpu_custom_call.1} parent=11 // pred_region
          %s286 = ssub.s32 128, 128
          %287 = vsyncadd [#allocation6], %s286
          %s289 = sshll.u32 [#allocation7], 4
          %s290 = int_to_ptr.vmem [resolvable:$true] %s289
          %292 = dma.hbm_to_vmem [thread:$0]  %s4, 128, %s290, [#allocation6]
        $region28: #{tpu_custom_call.1} parent=11 // pred_fallthru
          _
        // Predicated region
        $region29: #{tpu_custom_call.1} parent=11 // pred_check
          %p293 = pneg %p151
        $region30: #{tpu_custom_call.1} parent=11 // pred_check_branch
          %295 = sbr.rel (%p293) target = $region32
        $region31: #{tpu_custom_call.1} parent=11 // pred_region
          _
        $region32: #{tpu_custom_call.1} parent=11 // pred_fallthru
          _
        // Predicated region
        $region33: #{tpu_custom_call.1} parent=11 // pred_check
          %p296 = pneg %p172
        $region34: #{tpu_custom_call.1} parent=11 // pred_check_branch
          %298 = sbr.rel (%p296) target = $region36
        $region35: #{tpu_custom_call.1} parent=11 // pred_region
          _
        $region36: #{tpu_custom_call.1} parent=11 // pred_fallthru
          _
        // Predicated region
        $region37: #{tpu_custom_call.1} parent=11 // pred_check
          %p299 = pneg %p193
        $region38: #{tpu_custom_call.1} parent=11 // pred_check_branch
          %301 = sbr.rel (%p299) target = $region40
        $region39: #{tpu_custom_call.1} parent=11 // pred_region
          _
        $region40: #{tpu_custom_call.1} parent=11 // pred_fallthru
          _
        // Predicated region
        $region41: #{tpu_custom_call.1} parent=11 // pred_check
          %p302 = pneg %p214
        $region42: #{tpu_custom_call.1} parent=11 // pred_check_branch
          %304 = sbr.rel (%p302) target = $region44
        $region43: #{tpu_custom_call.1} parent=11 // pred_region
          _
        $region44: #{tpu_custom_call.1} parent=11 // pred_fallthru
          _
      $region12: #{tpu_custom_call.1} parent=5 // pred_fallthru
        _
      %p305 = scmp.lt.s32.totalorder %s20, 2
      // Predicated region
      $region45: #{tpu_custom_call.1} parent=5 // pred_check
        %p306 = pneg %p305
      $region46: #{tpu_custom_call.1} parent=5 // pred_check_branch
        %308 = sbr.rel (%p306) target = $region48
      $region47: #{tpu_custom_call.1} parent=5 // pred_region
        // Predicated region
        $region49: #{tpu_custom_call.1} parent=47 // pred_check
          %p309 = pneg %p40
        $region50: #{tpu_custom_call.1} parent=47 // pred_check_branch
          %311 = sbr.rel (%p309) target = $region52
        $region51: #{tpu_custom_call.1} parent=47 // pred_region
          %p312 = scmp.lt.s32.totalorder %s20, 1
          %s313 = scalar_select %p312, %s20, 1
          %s314 = smul.addr %s313, 2
          %s315 = smul.addr %s314, 8
          %s316 = scalar_lea.vmem %s0, %s315
        $region52: #{tpu_custom_call.1} parent=47 // pred_fallthru
          _
      $region48: #{tpu_custom_call.1} parent=5 // pred_fallthru
        _
      %p317 = scmp.le.s32.totalorder 1, %s20
      %p318 = scmp.lt.s32.totalorder %s20, 3
      %p319 = pnand %p317, %p318
      %p320 = pneg %p319
      // Predicated region
      $region53: #{tpu_custom_call.1} parent=5 // pred_check
        _
      $region54: #{tpu_custom_call.1} parent=5 // pred_check_branch
        %322 = sbr.rel (%p319) target = $region56
      $region55: #{tpu_custom_call.1} parent=5 // pred_region
        %s323 = ssub.s32 %s20, 1
        // Predicated region
        $region57: #{tpu_custom_call.1} parent=55 // pred_check
          %p324 = pneg %p67
        $region58: #{tpu_custom_call.1} parent=55 // pred_check_branch
          %326 = sbr.rel (%p324) target = $region60
        $region59: #{tpu_custom_call.1} parent=55 // pred_region
          %327 = dma.done [#allocation3], 288
        $region60: #{tpu_custom_call.1} parent=55 // pred_fallthru
          _
        // Predicated region
        $region61: #{tpu_custom_call.1} parent=55 // pred_check
          %p328 = pneg %p88
        $region62: #{tpu_custom_call.1} parent=55 // pred_check_branch
          %330 = sbr.rel (%p328) target = $region64
        $region63: #{tpu_custom_call.1} parent=55 // pred_region
          %331 = dma.done [#allocation6], 128
        $region64: #{tpu_custom_call.1} parent=55 // pred_fallthru
          _
        // Predicated region
        $region65: #{tpu_custom_call.1} parent=55 // pred_check
          %p332 = pneg %p130
        $region66: #{tpu_custom_call.1} parent=55 // pred_check_branch
          %334 = sbr.rel (%p332) target = $region68
        $region67: #{tpu_custom_call.1} parent=55 // pred_region
          %335 = dma.done [#allocation6], 128
        $region68: #{tpu_custom_call.1} parent=55 // pred_fallthru
          _
        %p336 = scmp.lt.s32.totalorder %s25, 1
        %s337 = scalar_select %p336, %s25, 1
        %s338 = smul.addr %s337, 2
        %s339 = smul.addr %s338, 8
        %s340 = scalar_lea.vmem %s0, %s339
        %p341 = pneg %p46
        %p342 = pneg %p43
        %p343 = pneg %p67
        %p344 = pneg %p64
        %p345 = pneg %p88
        %p346 = pneg %p85
        %p347 = pneg %p109
        %p348 = pneg %p106
        %p349 = pneg %p130
        %p350 = pneg %p127
        %p351 = pneg %p151
        %p352 = pneg %p148
        %p353 = pneg %p172
        %p354 = pneg %p169
        %p355 = pneg %p193
        %p356 = pneg %p190
        %p357 = pneg %p214
        %p358 = pneg %p211
        %p359 = pneg %p240
        %p360 = pneg %p237
        %s361 = sand.u32 %s227, 1
        %s362 = scalar_lea.sflag [#allocation4], %s361
        %s363 = sand.u32 %s227, 1
        %s364 = smul.addr %s363, 16
        %s365 = scalar_lea.vmem [#allocation8], %s364
        %p366 = scmp.lt.s32.totalorder %s25, 1
        %s367 = scalar_select %p366, %s25, 1
        %s368 = smul.addr %s367, 2
        %s369 = smul.addr %s368, 8
        %s370 = scalar_lea.vmem %s0, %s369
        %v371 = vld [vmem:[#allocation2] sm:$0x3]
        %v372 = vld [vmem:[#allocation2 + $0x2] sm:$0x3]
        %v373 = vld [vmem:[#allocation2 + $0x4] sm:$0x3]
        %v374 = vld [vmem:[#allocation2 + $0x6] sm:$0x3]
        %v375 = vld [vmem:[#allocation2 + $0xa] sm:$0x3]
        %v376 = vld [vmem:[#allocation2 + $0xc] sm:$0x3]
        %v377 = vld [vmem:[#allocation2 + $0xe] sm:$0x3]
        %v378 = vld [vmem:[#allocation2 + $0x10] sm:$0x3]
        %v379 = vld [vmem:[%s370] sm:$0xff]
        %v380 = vld [vmem:[%s370 + $0x8] sm:$0xff]
        %381 = vrot.lane.b32.xlu0 %v379, 17
        %v382 = vpop.permute.xlu0 %381
        %383 = vrot.lane.b32.xlu0 %v380, 17
        %v384 = vpop.permute.xlu0 %383
        %v385 = vlaneseq
        %v386 = vand.u32 %v385, 127
        %vm387 = vcmp.lt.s32.totalorder %v386, 17
        %v388 = vsel %vm387, %v382, %v384
        %v389 = vsel %vm387, %v384, %v382
        %v391 = vlaneseq
        %v392 = vshrl.u32 %v391, 7
        %v393 = vsub.s32 0, %v392
        %v394 = vrot.slane %v371, %v393
        %v395 = vlaneseq
        %v396 = vshrl.u32 %v395, 7
        %v397 = vsub.s32 1, %v396
        %v398 = vrot.slane %v371, %v397
        %v401 = vmul.f32 %v389, %v394
        %v402 = vmul.f32 %v388, %v398
        %403 = vrot.lane.b32.xlu0 %v379, 16
        %v404 = vpop.permute.xlu0 %403
        %405 = vrot.lane.b32.xlu0 %v380, 16
        %v406 = vpop.permute.xlu0 %405
        %vm407 = vcmp.lt.s32.totalorder %v386, 16
        %v408 = vsel %vm407, %v404, %v406
        %v409 = vsel %vm407, %v406, %v404
        %v411 = vlaneseq
        %v412 = vshrl.u32 %v411, 7
        %v413 = vsub.s32 0, %v412
        %v414 = vrot.slane %v372, %v413
        %v415 = vlaneseq
        %v416 = vshrl.u32 %v415, 7
        %v417 = vsub.s32 1, %v416
        %v418 = vrot.slane %v372, %v417
        %v421 = vmul.f32 %v409, %v414
        %v422 = vmul.f32 %v408, %v418
        %423 = vrot.lane.b32.xlu0 %v379, 15
        %v424 = vpop.permute.xlu0 %423
        %425 = vrot.lane.b32.xlu0 %v380, 15
        %v426 = vpop.permute.xlu0 %425
        %vm427 = vcmp.lt.s32.totalorder %v386, 15
        %v428 = vsel %vm427, %v424, %v426
        %v429 = vsel %vm427, %v426, %v424
        %v431 = vlaneseq
        %v432 = vshrl.u32 %v431, 7
        %v433 = vsub.s32 0, %v432
        %v434 = vrot.slane %v373, %v433
        %v435 = vlaneseq
        %v436 = vshrl.u32 %v435, 7
        %v437 = vsub.s32 1, %v436
        %v438 = vrot.slane %v373, %v437
        %v441 = vmul.f32 %v429, %v434
        %v442 = vmul.f32 %v428, %v438
        %443 = vrot.lane.b32.xlu0 %v379, 1
        %v444 = vpop.permute.xlu0 %443
        %445 = vrot.lane.b32.xlu0 %v380, 1
        %v446 = vpop.permute.xlu0 %445
        %vm447 = vcmp.lt.s32.totalorder %v386, 1
        %v448 = vsel %vm447, %v444, %v446
        %v449 = vsel %vm447, %v446, %v444
        %v451 = vlaneseq
        %v452 = vshrl.u32 %v451, 7
        %v453 = vsub.s32 0, %v452
        %v454 = vrot.slane %v374, %v453
        %v455 = vlaneseq
        %v456 = vshrl.u32 %v455, 7
        %v457 = vsub.s32 1, %v456
        %v458 = vrot.slane %v374, %v457
        %v461 = vmul.f32 %v449, %v454
        %v462 = vmul.f32 %v448, %v458
        %463 = vrot.lane.b32.xlu0 %v379, 127
        %v464 = vpop.permute.xlu0 %463
        %465 = vrot.lane.b32.xlu0 %v380, 127
        %v466 = vpop.permute.xlu0 %465
        %vm467 = vcmp.lt.s32.totalorder %v386, 127
        %v468 = vsel %vm467, %v464, %v466
        %v469 = vsel %vm467, %v466, %v464
        %v471 = vlaneseq
        %v472 = vshrl.u32 %v471, 7
        %v473 = vsub.s32 0, %v472
        %v474 = vrot.slane %v375, %v473
        %v475 = vlaneseq
        %v476 = vshrl.u32 %v475, 7
        %v477 = vsub.s32 1, %v476
        %v478 = vrot.slane %v375, %v477
        %v481 = vmul.f32 %v468, %v474
        %v482 = vmul.f32 %v469, %v478
        %483 = vrot.lane.b32.xlu0 %v379, 113
        %v484 = vpop.permute.xlu0 %483
        %485 = vrot.lane.b32.xlu0 %v380, 113
        %v486 = vpop.permute.xlu0 %485
        %vm487 = vcmp.lt.s32.totalorder %v386, 113
        %v488 = vsel %vm487, %v484, %v486
        %v489 = vsel %vm487, %v486, %v484
        %v491 = vlaneseq
        %v492 = vshrl.u32 %v491, 7
        %v493 = vsub.s32 0, %v492
        %v494 = vrot.slane %v376, %v493
        %v495 = vlaneseq
        %v496 = vshrl.u32 %v495, 7
        %v497 = vsub.s32 1, %v496
        %v498 = vrot.slane %v376, %v497
        %v501 = vmul.f32 %v488, %v494
        %v502 = vmul.f32 %v489, %v498
        %503 = vrot.lane.b32.xlu0 %v379, 112
        %v504 = vpop.permute.xlu0 %503
        %505 = vrot.lane.b32.xlu0 %v380, 112
        %v506 = vpop.permute.xlu0 %505
        %vm507 = vcmp.lt.s32.totalorder %v386, 112
        %v508 = vsel %vm507, %v504, %v506
        %v509 = vsel %vm507, %v506, %v504
        %v511 = vlaneseq
        %v512 = vshrl.u32 %v511, 7
        %v513 = vsub.s32 0, %v512
        %v514 = vrot.slane %v377, %v513
        %v515 = vlaneseq
        %v516 = vshrl.u32 %v515, 7
        %v517 = vsub.s32 1, %v516
        %v518 = vrot.slane %v377, %v517
        %v521 = vmul.f32 %v508, %v514
        %v522 = vmul.f32 %v509, %v518
        %523 = vrot.lane.b32.xlu0 %v379, 111
        %v524 = vpop.permute.xlu0 %523
        %525 = vrot.lane.b32.xlu0 %v380, 111
        %v526 = vpop.permute.xlu0 %525
        %vm527 = vcmp.lt.s32.totalorder %v386, 111
        %v528 = vsel %vm527, %v524, %v526
        %v529 = vsel %vm527, %v526, %v524
        %v531 = vlaneseq
        %v532 = vshrl.u32 %v531, 7
        %v533 = vsub.s32 0, %v532
        %v534 = vrot.slane %v378, %v533
        %v535 = vlaneseq
        %v536 = vshrl.u32 %v535, 7
        %v537 = vsub.s32 1, %v536
        %v538 = vrot.slane %v378, %v537
        %v541 = vmul.f32 %v528, %v534
        %v542 = vmul.f32 %v529, %v538
        %v543 = vld [vmem:[#allocation5] sm:$0xff]
        %vm544 = vcmask 588800
        %v546 = vsel %vm544, %v543, 0
        %548 = vmatprep.subr.mxu0 0.0
        %549 = vmatpush1.msra.mxu0 0.0
        %550 = vmatprep.subr.mxu0 0.0
        %551 = vmatpush1.msra.mxu0 0.0
        %552 = vmatprep.subr.mxu0 0.0
        %553 = vmatpush1.msra.mxu0 0.0
        %554 = vmatprep.subr.mxu0 0.0
        %555 = vmatpush1.msra.mxu0 0.0
        %556 = vmatprep.subr.mxu0 0.0
        %557 = vmatpush1.msra.mxu0 0.0
        %558 = vmatprep.subr.mxu0 0.0
        %559 = vmatpush1.msra.mxu0 0.0
        %560 = vmatprep.subr.mxu0 0.0
        %561 = vmatpush1.msra.mxu0 0.0
        %562 = vmatprep.subr.mxu0 %v542
        %563 = vmatpush1.msra.mxu0 %v541
        %564 = vmatprep.subr.mxu0 %v522
        %565 = vmatpush1.msra.mxu0 %v521
        %566 = vmatprep.subr.mxu0 %v502
        %567 = vmatpush1.msra.mxu0 %v501
        %568 = vmatprep.subr.mxu0 %v482
        %569 = vmatpush1.msra.mxu0 %v481
        %570 = vmatprep.subr.mxu0 %v380
        %571 = vmatpush1.msra.mxu0 %v379
        %572 = vmatprep.subr.mxu0 %v462
        %573 = vmatpush1.msra.mxu0 %v461
        %574 = vmatprep.subr.mxu0 %v442
        %575 = vmatpush1.msra.mxu0 %v441
        %576 = vmatprep.subr.mxu0 %v422
        %577 = vmatpush1.msra.mxu0 %v421
        %578 = vmatprep.subr.mxu0 %v402
        %579 = vmatpush1.msra.mxu0 %v401
        %580 = vmatprep.subr.mxu0 0.0
        %581 = vmatpush2.msra.mxu0 0.0
        %582 = vmatprep.subr.mxu0 0.0
        %583 = vmatpush2.msra.mxu0 0.0
        %584 = vmatprep.subr.mxu0 0.0
        %585 = vmatpush2.msra.mxu0 0.0
        %586 = vmatprep.subr.mxu0 0.0
        %587 = vmatpush2.msra.mxu0 0.0
        %588 = vmatprep.subr.mxu0 0.0
        %589 = vmatpush2.msra.mxu0 0.0
        %590 = vmatprep.subr.mxu0 0.0
        %591 = vmatpush2.msra.mxu0 0.0
        %592 = vmatprep.subr.mxu0 0.0
        %593 = vmatpush2.msra.mxu0 0.0
        %594 = vmatprep.subr.mxu0 0.0
        %595 = vmatpush2.msra.mxu0 0.0
        %596 = vmatprep.subr.mxu0 0.0
        %597 = vmatpush2.msra.mxu0 0.0
        %598 = vmatprep.subr.mxu0 0.0
        %599 = vmatpush2.msra.mxu0 0.0
        %600 = vmatprep.subr.mxu0 0.0
        %601 = vmatpush2.msra.mxu0 0.0
        %602 = vmatprep.subr.mxu0 0.0
        %603 = vmatpush2.msra.mxu0 0.0
        %604 = vmatprep.subr.mxu0 0.0
        %605 = vmatpush2.msra.mxu0 0.0
        %606 = vmatprep.subr.mxu0 0.0
        %607 = vmatpush2.msra.mxu0 0.0
        %608 = vmatprep.subr.mxu0 0.0
        %609 = vmatpush2.msra.mxu0 0.0
        %610 = vmatprep.subr.mxu0 0.0
        %611 = vmatpush2.msra.mxu0 0.0
        %612 = vmatprep.mubr.f32.mxu0 0.0
        %613 = vmatmul.mubr.f32.gmra.mxu0 %v546
        %v614 = vpop.f32.mrf.mxu0
        %v615 = vadd.f32 0.0, %v614
        %v616 = vpop.f32.mrf.mxu0
        %v617 = vadd.f32 0.0, %v616
        %618 = vdwg.mxu0
        %v619 = vld [vmem:[%s5] sm:$0xff]
        %621 = vset.pattern.permute.xlu0 0
        %622 = vperm.xlu0 %621, %v619
        %v623 = vpop.permute.xlu0 %622
        %v625 = vmul.f32 %v615, %v623
        %v626 = vmul.f32 %v617, %v623
        %v627 = vld [vmem:[%s6] sm:$0xff]
        %629 = vset.pattern.permute.xlu0 0
        %630 = vperm.xlu0 %629, %v627
        %v631 = vpop.permute.xlu0 %630
        %v633 = vadd.f32 %v625, %v631
        %v634 = vadd.f32 %v626, %v631
        %v635 = vmax.f32 %v633, 0.0
        %v636 = vmax.f32 %v634, 0.0
        %637 = vrot.lane.b32.xlu0 %v635, 17
        %v638 = vpop.permute.xlu0 %637
        %639 = vrot.lane.b32.xlu0 %v636, 17
        %v640 = vpop.permute.xlu0 %639
        %v641 = vsel %vm387, %v638, %v640
        %v642 = vsel %vm387, %v640, %v638
        %v643 = vmul.f32 %v642, %v394
        %v644 = vmul.f32 %v641, %v398
        %645 = vrot.lane.b32.xlu0 %v635, 16
        %v646 = vpop.permute.xlu0 %645
        %647 = vrot.lane.b32.xlu0 %v636, 16
        %v648 = vpop.permute.xlu0 %647
        %v649 = vsel %vm407, %v646, %v648
        %v650 = vsel %vm407, %v648, %v646
        %v651 = vmul.f32 %v650, %v414
        %v652 = vmul.f32 %v649, %v418
        %653 = vrot.lane.b32.xlu0 %v635, 15
        %v654 = vpop.permute.xlu0 %653
        %655 = vrot.lane.b32.xlu0 %v636, 15
        %v656 = vpop.permute.xlu0 %655
        %v657 = vsel %vm427, %v654, %v656
        %v658 = vsel %vm427, %v656, %v654
        %v659 = vmul.f32 %v658, %v434
        %v660 = vmul.f32 %v657, %v438
        %661 = vrot.lane.b32.xlu0 %v635, 1
        %v662 = vpop.permute.xlu0 %661
        %663 = vrot.lane.b32.xlu0 %v636, 1
        %v664 = vpop.permute.xlu0 %663
        %v665 = vsel %vm447, %v662, %v664
        %v666 = vsel %vm447, %v664, %v662
        %v667 = vmul.f32 %v666, %v454
        %v668 = vmul.f32 %v665, %v458
        %669 = vrot.lane.b32.xlu0 %v635, 127
        %v670 = vpop.permute.xlu0 %669
        %671 = vrot.lane.b32.xlu0 %v636, 127
        %v672 = vpop.permute.xlu0 %671
        %v673 = vsel %vm467, %v670, %v672
        %v674 = vsel %vm467, %v672, %v670
        %v675 = vmul.f32 %v673, %v474
        %v676 = vmul.f32 %v674, %v478
        %677 = vrot.lane.b32.xlu0 %v635, 113
        %v678 = vpop.permute.xlu0 %677
        %679 = vrot.lane.b32.xlu0 %v636, 113
        %v680 = vpop.permute.xlu0 %679
        %v681 = vsel %vm487, %v678, %v680
        %v682 = vsel %vm487, %v680, %v678
        %v683 = vmul.f32 %v681, %v494
        %v684 = vmul.f32 %v682, %v498
        %685 = vrot.lane.b32.xlu0 %v635, 112
        %v686 = vpop.permute.xlu0 %685
        %687 = vrot.lane.b32.xlu0 %v636, 112
        %v688 = vpop.permute.xlu0 %687
        %v689 = vsel %vm507, %v686, %v688
        %v690 = vsel %vm507, %v688, %v686
        %v691 = vmul.f32 %v689, %v514
        %v692 = vmul.f32 %v690, %v518
        %693 = vrot.lane.b32.xlu0 %v635, 111
        %v694 = vpop.permute.xlu0 %693
        %695 = vrot.lane.b32.xlu0 %v636, 111
        %v696 = vpop.permute.xlu0 %695
        %v697 = vsel %vm527, %v694, %v696
        %v698 = vsel %vm527, %v696, %v694
        %v699 = vmul.f32 %v697, %v534
        %v700 = vmul.f32 %v698, %v538
        %v701 = vld [vmem:[%s3] sm:$0xff]
        %v703 = vsel %vm544, %v701, 0
        %705 = vmatprep.subr.mxu0 0.0
        %706 = vmatpush1.msra.mxu0 0.0
        %707 = vmatprep.subr.mxu0 0.0
        %708 = vmatpush1.msra.mxu0 0.0
        %709 = vmatprep.subr.mxu0 0.0
        %710 = vmatpush1.msra.mxu0 0.0
        %711 = vmatprep.subr.mxu0 0.0
        %712 = vmatpush1.msra.mxu0 0.0
        %713 = vmatprep.subr.mxu0 0.0
        %714 = vmatpush1.msra.mxu0 0.0
        %715 = vmatprep.subr.mxu0 0.0
        %716 = vmatpush1.msra.mxu0 0.0
        %717 = vmatprep.subr.mxu0 0.0
        %718 = vmatpush1.msra.mxu0 0.0
        %719 = vmatprep.subr.mxu0 %v700
        %720 = vmatpush1.msra.mxu0 %v699
        %721 = vmatprep.subr.mxu0 %v692
        %722 = vmatpush1.msra.mxu0 %v691
        %723 = vmatprep.subr.mxu0 %v684
        %724 = vmatpush1.msra.mxu0 %v683
        %725 = vmatprep.subr.mxu0 %v676
        %726 = vmatpush1.msra.mxu0 %v675
        %727 = vmatprep.subr.mxu0 %v636
        %728 = vmatpush1.msra.mxu0 %v635
        %729 = vmatprep.subr.mxu0 %v668
        %730 = vmatpush1.msra.mxu0 %v667
        %731 = vmatprep.subr.mxu0 %v660
        %732 = vmatpush1.msra.mxu0 %v659
        %733 = vmatprep.subr.mxu0 %v652
        %734 = vmatpush1.msra.mxu0 %v651
        %735 = vmatprep.subr.mxu0 %v644
        %736 = vmatpush1.msra.mxu0 %v643
        %737 = vmatprep.subr.mxu0 0.0
        %738 = vmatpush2.msra.mxu0 0.0
        %739 = vmatprep.subr.mxu0 0.0
        %740 = vmatpush2.msra.mxu0 0.0
        %741 = vmatprep.subr.mxu0 0.0
        %742 = vmatpush2.msra.mxu0 0.0
        %743 = vmatprep.subr.mxu0 0.0
        %744 = vmatpush2.msra.mxu0 0.0
        %745 = vmatprep.subr.mxu0 0.0
        %746 = vmatpush2.msra.mxu0 0.0
        %747 = vmatprep.subr.mxu0 0.0
        %748 = vmatpush2.msra.mxu0 0.0
        %749 = vmatprep.subr.mxu0 0.0
        %750 = vmatpush2.msra.mxu0 0.0
        %751 = vmatprep.subr.mxu0 0.0
        %752 = vmatpush2.msra.mxu0 0.0
        %753 = vmatprep.subr.mxu0 0.0
        %754 = vmatpush2.msra.mxu0 0.0
        %755 = vmatprep.subr.mxu0 0.0
        %756 = vmatpush2.msra.mxu0 0.0
        %757 = vmatprep.subr.mxu0 0.0
        %758 = vmatpush2.msra.mxu0 0.0
        %759 = vmatprep.subr.mxu0 0.0
        %760 = vmatpush2.msra.mxu0 0.0
        %761 = vmatprep.subr.mxu0 0.0
        %762 = vmatpush2.msra.mxu0 0.0
        %763 = vmatprep.subr.mxu0 0.0
        %764 = vmatpush2.msra.mxu0 0.0
        %765 = vmatprep.subr.mxu0 0.0
        %766 = vmatpush2.msra.mxu0 0.0
        %767 = vmatprep.subr.mxu0 0.0
        %768 = vmatpush2.msra.mxu0 0.0
        %769 = vmatprep.mubr.f32.mxu0 0.0
        %770 = vmatmul.mubr.f32.gmra.mxu0 %v703
        %v771 = vpop.f32.mrf.mxu0
        %v772 = vadd.f32 0.0, %v771
        %v773 = vpop.f32.mrf.mxu0
        %v774 = vadd.f32 0.0, %v773
        %775 = vdwg.mxu0
        %v776 = vld [vmem:[%s7] sm:$0xff]
        %778 = vset.pattern.permute.xlu0 0
        %779 = vperm.xlu0 %778, %v776
        %v780 = vpop.permute.xlu0 %779
        %v782 = vmul.f32 %v772, %v780
        %v783 = vmul.f32 %v774, %v780
        %v784 = vld [vmem:[%s8] sm:$0xff]
        %786 = vset.pattern.permute.xlu0 0
        %787 = vperm.xlu0 %786, %v784
        %v788 = vpop.permute.xlu0 %787
        %v790 = vadd.f32 %v782, %v788
        %v791 = vadd.f32 %v783, %v788
        %v792 = vmax.f32 %v790, 0.0
        %v793 = vmax.f32 %v791, 0.0
        %794 = vrot.lane.b32.xlu0 %v792, 17
        %v795 = vpop.permute.xlu0 %794
        %796 = vrot.lane.b32.xlu0 %v793, 17
        %v797 = vpop.permute.xlu0 %796
        %v798 = vsel %vm387, %v795, %v797
        %v799 = vsel %vm387, %v797, %v795
        %v800 = vmul.f32 %v799, %v394
        %v801 = vmul.f32 %v798, %v398
        %802 = vrot.lane.b32.xlu0 %v792, 16
        %v803 = vpop.permute.xlu0 %802
        %804 = vrot.lane.b32.xlu0 %v793, 16
        %v805 = vpop.permute.xlu0 %804
        %v806 = vsel %vm407, %v803, %v805
        %v807 = vsel %vm407, %v805, %v803
        %v808 = vmul.f32 %v807, %v414
        %v809 = vmul.f32 %v806, %v418
        %810 = vrot.lane.b32.xlu0 %v792, 15
        %v811 = vpop.permute.xlu0 %810
        %812 = vrot.lane.b32.xlu0 %v793, 15
        %v813 = vpop.permute.xlu0 %812
        %v814 = vsel %vm427, %v811, %v813
        %v815 = vsel %vm427, %v813, %v811
        %v816 = vmul.f32 %v815, %v434
        %v817 = vmul.f32 %v814, %v438
        %818 = vrot.lane.b32.xlu0 %v792, 1
        %v819 = vpop.permute.xlu0 %818
        %820 = vrot.lane.b32.xlu0 %v793, 1
        %v821 = vpop.permute.xlu0 %820
        %v822 = vsel %vm447, %v819, %v821
        %v823 = vsel %vm447, %v821, %v819
        %v824 = vmul.f32 %v823, %v454
        %v825 = vmul.f32 %v822, %v458
        %826 = vrot.lane.b32.xlu0 %v792, 127
        %v827 = vpop.permute.xlu0 %826
        %828 = vrot.lane.b32.xlu0 %v793, 127
        %v829 = vpop.permute.xlu0 %828
        %v830 = vsel %vm467, %v827, %v829
        %v831 = vsel %vm467, %v829, %v827
        %v832 = vmul.f32 %v830, %v474
        %v833 = vmul.f32 %v831, %v478
        %834 = vrot.lane.b32.xlu0 %v792, 113
        %v835 = vpop.permute.xlu0 %834
        %836 = vrot.lane.b32.xlu0 %v793, 113
        %v837 = vpop.permute.xlu0 %836
        %v838 = vsel %vm487, %v835, %v837
        %v839 = vsel %vm487, %v837, %v835
        %v840 = vmul.f32 %v838, %v494
        %v841 = vmul.f32 %v839, %v498
        %842 = vrot.lane.b32.xlu0 %v792, 112
        %v843 = vpop.permute.xlu0 %842
        %844 = vrot.lane.b32.xlu0 %v793, 112
        %v845 = vpop.permute.xlu0 %844
        %v846 = vsel %vm507, %v843, %v845
        %v847 = vsel %vm507, %v845, %v843
        %v848 = vmul.f32 %v846, %v514
        %v849 = vmul.f32 %v847, %v518
        %850 = vrot.lane.b32.xlu0 %v792, 111
        %v851 = vpop.permute.xlu0 %850
        %852 = vrot.lane.b32.xlu0 %v793, 111
        %v853 = vpop.permute.xlu0 %852
        %v854 = vsel %vm527, %v851, %v853
        %v855 = vsel %vm527, %v853, %v851
        %v856 = vmul.f32 %v854, %v534
        %v857 = vmul.f32 %v855, %v538
        %v858 = vld [vmem:[#allocation7] sm:$0xff]
        %v860 = vsel %vm544, %v858, 0
        %862 = vmatprep.subr.mxu0 0.0
        %863 = vmatpush1.msra.mxu0 0.0
        %864 = vmatprep.subr.mxu0 0.0
        %865 = vmatpush1.msra.mxu0 0.0
        %866 = vmatprep.subr.mxu0 0.0
        %867 = vmatpush1.msra.mxu0 0.0
        %868 = vmatprep.subr.mxu0 0.0
        %869 = vmatpush1.msra.mxu0 0.0
        %870 = vmatprep.subr.mxu0 0.0
        %871 = vmatpush1.msra.mxu0 0.0
        %872 = vmatprep.subr.mxu0 0.0
        %873 = vmatpush1.msra.mxu0 0.0
        %874 = vmatprep.subr.mxu0 0.0
        %875 = vmatpush1.msra.mxu0 0.0
        %876 = vmatprep.subr.mxu0 %v857
        %877 = vmatpush1.msra.mxu0 %v856
        %878 = vmatprep.subr.mxu0 %v849
        %879 = vmatpush1.msra.mxu0 %v848
        %880 = vmatprep.subr.mxu0 %v841
        %881 = vmatpush1.msra.mxu0 %v840
        %882 = vmatprep.subr.mxu0 %v833
        %883 = vmatpush1.msra.mxu0 %v832
        %884 = vmatprep.subr.mxu0 %v793
        %885 = vmatpush1.msra.mxu0 %v792
        %886 = vmatprep.subr.mxu0 %v825
        %887 = vmatpush1.msra.mxu0 %v824
        %888 = vmatprep.subr.mxu0 %v817
        %889 = vmatpush1.msra.mxu0 %v816
        %890 = vmatprep.subr.mxu0 %v809
        %891 = vmatpush1.msra.mxu0 %v808
        %892 = vmatprep.subr.mxu0 %v801
        %893 = vmatpush1.msra.mxu0 %v800
        %894 = vmatprep.subr.mxu0 0.0
        %895 = vmatpush2.msra.mxu0 0.0
        %896 = vmatprep.subr.mxu0 0.0
        %897 = vmatpush2.msra.mxu0 0.0
        %898 = vmatprep.subr.mxu0 0.0
        %899 = vmatpush2.msra.mxu0 0.0
        %900 = vmatprep.subr.mxu0 0.0
        %901 = vmatpush2.msra.mxu0 0.0
        %902 = vmatprep.subr.mxu0 0.0
        %903 = vmatpush2.msra.mxu0 0.0
        %904 = vmatprep.subr.mxu0 0.0
        %905 = vmatpush2.msra.mxu0 0.0
        %906 = vmatprep.subr.mxu0 0.0
        %907 = vmatpush2.msra.mxu0 0.0
        %908 = vmatprep.subr.mxu0 0.0
        %909 = vmatpush2.msra.mxu0 0.0
        %910 = vmatprep.subr.mxu0 0.0
        %911 = vmatpush2.msra.mxu0 0.0
        %912 = vmatprep.subr.mxu0 0.0
        %913 = vmatpush2.msra.mxu0 0.0
        %914 = vmatprep.subr.mxu0 0.0
        %915 = vmatpush2.msra.mxu0 0.0
        %916 = vmatprep.subr.mxu0 0.0
        %917 = vmatpush2.msra.mxu0 0.0
        %918 = vmatprep.subr.mxu0 0.0
        %919 = vmatpush2.msra.mxu0 0.0
        %920 = vmatprep.subr.mxu0 0.0
        %921 = vmatpush2.msra.mxu0 0.0
        %922 = vmatprep.subr.mxu0 0.0
        %923 = vmatpush2.msra.mxu0 0.0
        %924 = vmatprep.subr.mxu0 0.0
        %925 = vmatpush2.msra.mxu0 0.0
        %926 = vmatprep.mubr.f32.mxu0 0.0
        %927 = vmatmul.mubr.f32.gmra.mxu0 %v860
        %v928 = vpop.f32.mrf.mxu0
        %v929 = vadd.f32 %v615, %v928
        %v930 = vpop.f32.mrf.mxu0
        %v931 = vadd.f32 %v617, %v930
        %932 = vdwg.mxu0
        %933 = vst [vmem:[%s365] sm:$0xff] %v929
        %934 = vst [vmem:[%s365 + $0x8] sm:$0xff] %v931
        %s935 = sand.u32 %s227, 1
        %s936 = scalar_lea.sflag [#allocation4], %s935
        %s937 = sand.u32 %s227, 1
        %s938 = smul.addr %s937, 16
        %s939 = scalar_lea.vmem [#allocation8], %s938
        // Predicated region
        $region69: #{tpu_custom_call.1} parent=55 // pred_check
          %p940 = pneg %p237
        $region70: #{tpu_custom_call.1} parent=55 // pred_check_branch
          %942 = sbr.rel (%p940) target = $region72
        $region71: #{tpu_custom_call.1} parent=55 // pred_region
          %s944 = ssub.s32 256, 256
          %945 = vsyncadd %s936, %s944
          %s946 = smul.addr %s25, 2
          %s947 = smul.addr %s946, 128
          %s948 = scalar_lea.hbm %s9, %s947
          %s950 = sshll.u32 %s939, 4
          %s951 = int_to_ptr.vmem [resolvable:$true] %s950
          %953 = dma.vmem_to_hbm [thread:$0]  %s951, 256, %s948, %s936
        $region72: #{tpu_custom_call.1} parent=55 // pred_fallthru
          _
      $region56: #{tpu_custom_call.1} parent=5 // pred_fallthru
        _
      %p954 = scmp.le.s32.totalorder 2, %s20
      // Predicated region
      $region73: #{tpu_custom_call.1} parent=5 // pred_check
        %p955 = pneg %p954
      $region74: #{tpu_custom_call.1} parent=5 // pred_check_branch
        %957 = sbr.rel (%p955) target = $region76
      $region75: #{tpu_custom_call.1} parent=5 // pred_region
        %s958 = ssub.s32 %s20, 2
        // Predicated region
        $region77: #{tpu_custom_call.1} parent=75 // pred_check
          %p959 = pneg %p243
        $region78: #{tpu_custom_call.1} parent=75 // pred_check_branch
          %961 = sbr.rel (%p959) target = $region80
        $region79: #{tpu_custom_call.1} parent=75 // pred_region
          %s962 = sand.u32 %s228, 1
          %s963 = scalar_lea.sflag [#allocation4], %s962
          %s964 = sand.u32 %s228, 1
          %s965 = smul.addr %s964, 16
          %s966 = scalar_lea.vmem [#allocation8], %s965
          %967 = dma.done %s963, 256
        $region80: #{tpu_custom_call.1} parent=75 // pred_fallthru
          _
      $region76: #{tpu_custom_call.1} parent=5 // pred_fallthru
        _
    $region6: #{tpu_custom_call.1} parent=1 // loop_footer
      %s24 = sadd.s32 1, %s20
    $region7: #{tpu_custom_call.1} parent=1 // loop_footer_branch
      %19 = sbr.rel target = $region3
    $region8: #{tpu_custom_call.1} parent=1 // loop_exit
      _
    %968 = vsyncpa [#allocation3], 1
    %s969 = scalar_lea.sflag [#allocation3], 1
    %970 = vsyncpa %s969, 1
    %971 = vsyncpa [#allocation6], 1
    %972 = vsyncpa [#allocation4], 1
    %s973 = scalar_lea.sflag [#allocation4], 1
    %974 = vsyncpa %s973, 1

</llo_original>
